<compile_context>
chip_gen: v7x
topology: tpu7x:2x2x1
jax: 0.10.0
libtpu: 0.0.40
codegen_flags: <defaults>
</compile_context>

<pallas_src>
import numpy as np
import jax
import jax.numpy as jnp
from jax.experimental import pallas as pl
from jax.experimental.pallas import tpu as pltpu

_LANE = 128
_SUBLANE = 8
_TARGET_BLOCK_BYTES = 2 * 1024 * 1024  # ~2 MiB per block buffer


def _round_up(a: int, b: int) -> int:
    return ((a + b - 1) // b) * b


def _drop_path_kernel(scale_ref, x_ref, o_ref):
    """One block: (TB, TR, 128) of payload, (TB, 1, 1) per-sample scales.

    scale_ref values are 0.0 (dropped) or 1/keep_prob (kept), float32.
    Multiply is done in f32 regardless of input dtype (free on a mem-bound
    kernel); result is cast back to the output dtype on store.
    """
    x = x_ref[...].astype(jnp.float32)
    o_ref[...] = (x * scale_ref[...]).astype(o_ref.dtype)


def drop_path(x, drop_prob, training: bool, *, key=None, seed: int = 0):
    """Pallas-backed drop_path. x: (B, ...) — any trailing dims.

    NOTE: thread a fresh `key` (or `seed`) per forward call to get fresh
    randomness each step (like torch.rand); a fixed seed reproduces the same
    per-sample mask every call.
    """
    if drop_prob is None or float(drop_prob) == 0.0 or not training:
        return x
    keep_prob = 1.0 - float(drop_prob)
    B = int(x.shape[0])
    L = int(np.prod(x.shape[1:]))
    if B == 0 or L == 0:
        return x

    # Per-sample Bernoulli(keep_prob) -> scale (0 or 1/keep_prob), tiny (B,).
    if key is None:
        key = jax.random.PRNGKey(seed)
    u = jax.random.uniform(key, (B,), dtype=jnp.float32)
    mask = jnp.floor(keep_prob + u)                       # 1.0 w.p. keep_prob else 0.0
    scale = (mask * jnp.float32(1.0 / keep_prob)).reshape(B, 1, 1)

    # Lane/sublane-dense view (B, r, 128); pad only to the 128-lane boundary
    # (no pad at all when L is already a multiple of 128 — the common case).
    l_pad = _round_up(L, _LANE)
    r = l_pad // _LANE
    x2 = x.reshape(B, L)
    if l_pad != L:
        x2 = jnp.pad(x2, ((0, 0), (0, l_pad - L)))
    x3 = x2.reshape(B, r, _LANE)

    itemsize = int(jnp.dtype(x.dtype).itemsize)
    budget_rows = (_TARGET_BLOCK_BYTES // (_LANE * itemsize)) // _SUBLANE * _SUBLANE
    budget_rows = max(_SUBLANE, budget_rows)

    if r <= budget_rows:
        # Whole sample fits in one block: pack several samples per grid step
        # so the per-step payload stays near the byte budget.
        tb = max(1, min(B, budget_rows // r))
        grid = (pl.cdiv(B, tb),)
        x_spec = pl.BlockSpec((tb, r, _LANE), lambda i: (i, 0, 0))
        s_spec = pl.BlockSpec((tb, 1, 1), lambda i: (i, 0, 0))
        o_spec = pl.BlockSpec((tb, r, _LANE), lambda i: (i, 0, 0))
    else:
        # Large per-sample payload: tile rows; flatten (sample, tile) into a
        # single parallel axis so megacore sharding balances on v7x.
        tile_rows = budget_rows
        n_tiles = pl.cdiv(r, tile_rows)           # ragged last block handled by Pallas
        grid = (B * n_tiles,)
        x_spec = pl.BlockSpec((1, tile_rows, _LANE),
                              lambda t: (t // n_tiles, t % n_tiles, 0))
        s_spec = pl.BlockSpec((1, 1, 1), lambda t: (t // n_tiles, 0, 0))
        o_spec = pl.BlockSpec((1, tile_rows, _LANE),
                              lambda t: (t // n_tiles, t % n_tiles, 0))

    out3 = pl.pallas_call(
        _drop_path_kernel,
        out_shape=jax.ShapeDtypeStruct((B, r, _LANE), x.dtype),
        grid=grid,
        in_specs=[s_spec, x_spec],
        out_specs=o_spec,
        compiler_params=pltpu.CompilerParams(
            dimension_semantics=("parallel",),
            vmem_limit_bytes=32 * 1024 * 1024,
        ),
    )(scale, x3)

    out2 = out3.reshape(B, l_pad)
    if l_pad != L:
        out2 = out2[:, :L]
    return out2.reshape(x.shape)


class DropPath:
    """JAX/Pallas equivalent of the PyTorch DropPath module (no parameters)."""

    def __init__(self, drop_prob=None):
        self.drop_prob = drop_prob
        self.training = True

    def __call__(self, x, *, key=None, seed: int = 0):
        return drop_path(x, self.drop_prob, self.training, key=key, seed=seed)


def _check_samplewise(xa, ya, keep_prob, tol):
    ok = True
    for b in range(xa.shape[0]):
        zero = np.allclose(ya[b], 0.0, atol=tol)
        scaled = np.allclose(ya[b], xa[b] / keep_prob, rtol=tol, atol=tol)
        ok = ok and (zero or scaled)
    return ok


if __name__ == "__main__":
    root = jax.random.PRNGKey(0)
    # Small NCHW input consistent with a ViT-det feature map (L = 1024, lane-aligned).
    x = jax.random.normal(root, (2, 4, 16, 16), dtype=jnp.float32)

    module = DropPath(drop_prob=0.5)
    keep_prob = 1.0 - module.drop_prob
    ok = True

    # Training mode: stochastic per-sample drop + rescale (no-pad fast path).
    module.training = True
    y = jax.block_until_ready(module(x, key=jax.random.PRNGKey(1234)))
    ok = ok and _check_samplewise(np.asarray(x), np.asarray(y), keep_prob, 1e-5)

    # bf16 path: load/store bf16, multiply in f32 in-register.
    xb = x.astype(jnp.bfloat16)
    yb = jax.block_until_ready(module(xb, key=jax.random.PRNGKey(7)))
    ok = ok and _check_samplewise(np.asarray(xb, dtype=np.float32),
                                  np.asarray(yb, dtype=np.float32), keep_prob, 1e-2)

    # Non-lane-aligned shape: exercises the 128-lane pad/slice path (B=3, L=315).
    x_odd = jax.random.normal(jax.random.PRNGKey(2), (3, 5, 7, 9), dtype=jnp.float32)
    y_odd = jax.block_until_ready(module(x_odd, key=jax.random.PRNGKey(11)))
    ok = ok and _check_samplewise(np.asarray(x_odd), np.asarray(y_odd), keep_prob, 1e-5)

    # Large per-sample payload: exercises the row-tiled path + ragged last block
    # (r = 4100 > 4096-row budget for f32).
    x_big = jax.random.normal(jax.random.PRNGKey(3), (2, 4100, 128), dtype=jnp.float32)
    y_big = jax.block_until_ready(module(x_big, key=jax.random.PRNGKey(21)))
    ok = ok and _check_samplewise(np.asarray(x_big), np.asarray(y_big), keep_prob, 1e-5)

    # Eval mode (or drop_prob == 0): identity.
    module.training = False
    y_eval = jax.block_until_ready(module(x))
    ok = ok and np.allclose(np.asarray(y_eval), np.asarray(x))

    if ok:
        print("KERNEL_OK")
    else:
        raise SystemExit("drop_path output did not match expected semantics")
</pallas_src>

<mosaic_0001>
module attributes {stable_mosaic.version = 11 : i64} {
  func.func @_drop_path_kernel(%arg0: i32, %arg1: memref<2x1x1xf32, #tpu.memory_space<vmem>>, %arg2: memref<2x8x128xf32, #tpu.memory_space<vmem>>, %arg3: memref<2x8x128xf32, #tpu.memory_space<vmem>>) attributes {dimension_semantics = [#tpu.dimension_semantics<parallel>], iteration_bounds = array<i64: 1>, scalar_prefetch = 0 : i64, scratch_operands = 0 : i64, tpu.core_type = #tpu.core_type<tc>, window_params = [{transform_indices = @transform_0, window_bounds = array<i64: 2, 1, 1>}, {transform_indices = @transform_1, window_bounds = array<i64: 2, 8, 128>}, {transform_indices = @transform_2, window_bounds = array<i64: 2, 8, 128>}]} {
    %c0 = arith.constant 0 : index
    %c0_0 = arith.constant 0 : index
    %c0_1 = arith.constant 0 : index
    %0 = vector.load %arg2[%c0, %c0_0, %c0_1] : memref<2x8x128xf32, #tpu.memory_space<vmem>>, vector<2x8x128xf32>
    %c0_2 = arith.constant 0 : index
    %c0_3 = arith.constant 0 : index
    %c0_4 = arith.constant 0 : index
    %1 = vector.load %arg1[%c0_2, %c0_3, %c0_4] : memref<2x1x1xf32, #tpu.memory_space<vmem>>, vector<2x1x1xf32>
    %2 = vector.broadcast %1 : vector<2x1x1xf32> to vector<2x8x128xf32>
    %3 = arith.mulf %0, %2 : vector<2x8x128xf32>
    %c0_5 = arith.constant 0 : index
    %c0_6 = arith.constant 0 : index
    %c0_7 = arith.constant 0 : index
    %4 = vector.load %arg3[%c0_5, %c0_6, %c0_7] : memref<2x8x128xf32, #tpu.memory_space<vmem>>, vector<2x8x128xf32>
    tpu.vector_store %arg3[%c0_5, %c0_6, %c0_7], %3 {strides = array<i32>} : memref<2x8x128xf32, #tpu.memory_space<vmem>>, vector<2x8x128xf32>,
    return
  }
  func.func @transform_0(%arg0: i32) -> (i32, i32, i32) {
    %c0_i32 = arith.constant 0 : i32
    %c0_i32_0 = arith.constant 0 : i32
    %c0_i32_1 = arith.constant 0 : i32
    return %arg0, %c0_i32, %c0_i32_0 : i32, i32, i32
  }
  func.func @transform_1(%arg0: i32) -> (i32, i32, i32) {
    %c0_i32 = arith.constant 0 : i32
    %c0_i32_0 = arith.constant 0 : i32
    %c0_i32_1 = arith.constant 0 : i32
    return %arg0, %c0_i32, %c0_i32_0 : i32, i32, i32
  }
  func.func @transform_2(%arg0: i32) -> (i32, i32, i32) {
    %c0_i32 = arith.constant 0 : i32
    %c0_i32_0 = arith.constant 0 : i32
    %c0_i32_1 = arith.constant 0 : i32
    return %arg0, %c0_i32, %c0_i32_0 : i32, i32, i32
  }
}

</mosaic_0001>

<llo_original>
// kernel: tpu_custom_call.1
$region0: #{tpu_custom_call.1}
  #allocation0 [shape = 'u32[]', space=smem, size = 0x4, offset = 0x4, fixed_abs, tag = 'smem constant byte address 0x4 - core index']
  #allocation1 [shape = 'u32[144,128]{1,0:T(1,128)}', space=vmem, size = 0x12000, scoped, tag = 'internal scratch']
  %s0 = inlined_call_operand.vmem [shape: f32[2,1,1], index: 0, kind: input, shape index: {}]
  %s1 = inlined_call_operand.hbm [shape: f32[2,8,128], index: 1, kind: input, shape index: {}]
  %s2 = inlined_call_operand.hbm [shape: f32[2,8,128], index: 2, kind: output, shape index: {}]
  %s3 = sld [smem:[#allocation0]]
  $region22: #{tpu_custom_call.1} parent=0
    _
  %s5 = ssub.s32 1, %s3
  %s6 = scalar_select 0, %s5, %s3
  $region1: #{tpu_custom_call.1} parent=0
    #allocation2 [shape = 'u8[8192]{0}', space=vmem, size = 0x2000, scoped, tag = 'input window, operand 1, single buffered']
    #allocation3 [shape = 's32[1]{0}', space=sflag, size = 0x4, scoped, tag = 'scoped memory for tpu_custom_call.1']
    #allocation4 [shape = 's32[1]{0}', space=sflag, size = 0x4, scoped, tag = 'scoped memory for tpu_custom_call.1']
    #allocation5 [shape = 'u8[8192]{0}', space=vmem, size = 0x2000, scoped, tag = 'output window, operand 0, single buffered']
    %7 = vsyncpa [#allocation3], 0
    %8 = vsyncpa [#allocation4], 0
    // Predicated region
    $region2: #{tpu_custom_call.1} parent=1 // pred_check
      _
    $region3: #{tpu_custom_call.1} parent=1 // pred_check_branch
      %10 = sbr.rel (0) target = $region5
    $region4: #{tpu_custom_call.1} parent=1 // pred_region
      _
    $region5: #{tpu_custom_call.1} parent=1 // pred_fallthru
      _
    // Predicated region
    $region6: #{tpu_custom_call.1} parent=1 // pred_check
      _
    $region7: #{tpu_custom_call.1} parent=1 // pred_check_branch
      %12 = sbr.rel (0) target = $region9
    $region8: #{tpu_custom_call.1} parent=1 // pred_region
      %s14 = ssub.s32 256, 256
      %15 = vsyncadd [#allocation3], %s14
      %s16 = sshll.u32 [#allocation2], 4
      %s17 = int_to_ptr.vmem [resolvable:$true] %s16
      %22 = dma.hbm_to_vmem [thread:$0]  %s1, 256, %s17, [#allocation3], 128, 128, 8
    $region9: #{tpu_custom_call.1} parent=1 // pred_fallthru
      _
    // Predicated region
    $region10: #{tpu_custom_call.1} parent=1 // pred_check
      _
    $region11: #{tpu_custom_call.1} parent=1 // pred_check_branch
      %24 = sbr.rel (0) target = $region13
    $region12: #{tpu_custom_call.1} parent=1 // pred_region
      %25 = dma.done [#allocation3], 256
    $region13: #{tpu_custom_call.1} parent=1 // pred_fallthru
      _
    %v26 = vld [vmem:[#allocation2] sm:$0xff]
    %v27 = vld [vmem:[#allocation2 + $0x8] sm:$0xff]
    %v28 = vld [vmem:[%s0] sm:$0x1]
    %v29 = vld [vmem:[%s0 + $0x1] sm:$0x1]
    %v32 = vlaneseq
    %v33 = vshrl.u32 %v32, 7
    %v34 = vsub.s32 0, %v33
    %v35 = vrot.slane %v28, %v34
    %v36 = vlaneseq
    %v37 = vshrl.u32 %v36, 7
    %v38 = vsub.s32 0, %v37
    %v39 = vrot.slane %v29, %v38
    %40 = vset.pattern.permute.xlu0 0
    %41 = vperm.xlu0 %40, %v35
    %v42 = vpop.permute.xlu0 %41
    %44 = vset.pattern.permute.xlu0 0
    %45 = vperm.xlu0 %44, %v39
    %v46 = vpop.permute.xlu0 %45
    %v48 = vmul.f32 %v26, %v42
    %v49 = vmul.f32 %v27, %v46
    %50 = vst [vmem:[#allocation5] sm:$0xff] %v48
    %51 = vst [vmem:[#allocation5 + $0x8] sm:$0xff] %v49
    // Predicated region
    $region14: #{tpu_custom_call.1} parent=1 // pred_check
      _
    $region15: #{tpu_custom_call.1} parent=1 // pred_check_branch
      %53 = sbr.rel (0) target = $region17
    $region16: #{tpu_custom_call.1} parent=1 // pred_region
      %s55 = ssub.s32 256, 256
      %56 = vsyncadd [#allocation4], %s55
      %s57 = sshll.u32 [#allocation5], 4
      %s58 = int_to_ptr.vmem [resolvable:$true] %s57
      %63 = dma.vmem_to_hbm [thread:$0]  %s58, 256, %s2, [#allocation4], 128, 128, 8
    $region17: #{tpu_custom_call.1} parent=1 // pred_fallthru
      _
    // Predicated region
    $region18: #{tpu_custom_call.1} parent=1 // pred_check
      _
    $region19: #{tpu_custom_call.1} parent=1 // pred_check_branch
      %65 = sbr.rel (0) target = $region21
    $region20: #{tpu_custom_call.1} parent=1 // pred_region
      %66 = dma.done [#allocation4], 256
    $region21: #{tpu_custom_call.1} parent=1 // pred_fallthru
      _
    %67 = vsyncpa [#allocation3], 1
    %68 = vsyncpa [#allocation4], 1

</llo_original>
